<compile_context>
chip_gen: v5e
topology: v5e:2x2
jax: 0.10.0
libtpu: 0.0.40
codegen_flags: <defaults>
</compile_context>

<pallas_src>
import jax
import jax.numpy as jnp
from jax import lax
from jax.experimental import pallas as pl
from jax.experimental.pallas import tpu as pltpu


def mlp_kernel(x_ref, w_ref, b_ref, dw_ref, db_ref, o_ref):
    # x_ref / o_ref: (tile_rows, 128) f32 blocks of the flat row-major (B, 2)
    # tensor: lane 2j holds feature 0 of a batch element, lane 2j+1 feature 1.
    # w_ref:  (10, 128)  row k = [W1[k,0], W1[k,1], W1[k,0], ...] (lane table)
    # b_ref:  (10, 128)  row k = b1[k] replicated
    # dw_ref: (10, 128)  row k = (W2[1,k] - W2[0,k]) replicated
    # db_ref: (1, 128)   b2[1] - b2[0] replicated
    x = x_ref[...]                                        # (R, 128)

    lane = lax.broadcasted_iota(jnp.int32, (1, 128), 1)
    even = (lane & 1) == 0                                # (1, 128) even-lane mask

    # fc1 + ReLU + fc2 logit difference, as lane-local VPU FMAs plus one XLU
    # roll per hidden unit to sum the two features of each lane pair.
    d = jnp.zeros_like(x)                                 # accumulates z1 - z0
    for k in range(10):                                   # hidden dim, unrolled
        t = x * w_ref[k:k + 1, :]                         # wk0*x0 | wk1*x1
        s = t + pltpu.roll(t, 127, axis=1)                # even lane: wk0*x0 + wk1*x1
        h = jnp.maximum(s + b_ref[k:k + 1, :], 0.0)       # ReLU(fc1_k) (even lanes valid)
        d = d + dw_ref[k:k + 1, :] * h                    # += dw_k * h_k
    d = d + db_ref[...]                                   # + db (even lanes valid)

    # Replicate d to the odd lane of each pair, then 2-class softmax with a
    # single exp: p0 = 1/(1+e^d) at even lanes, p1 = 1/(1+e^-d) at odd lanes.
    d_pair = jnp.where(even, d, pltpu.roll(d, 1, axis=1))
    arg = jnp.where(even, d_pair, -d_pair)
    o_ref[...] = (1.0 / (1.0 + jnp.exp(arg))).astype(o_ref.dtype)


def _round_up(n, m):
    return ((n + m - 1) // m) * m


def simple_model_forward(x, W1, b1, W2, b2, block_rows=2048):
    """x: (B, 2) f32. W1: (10, 2), b1: (10,), W2: (2, 10), b2: (2,) (torch layouts).

    Returns (B, 2) softmax probabilities, matching SimpleModel.forward.
    """
    B = x.shape[0]
    n = 2 * B
    rows = pl.cdiv(n, 128)
    total = rows * 128

    # Free (contiguous/bitcast) reshape of the natural layout; pad only a
    # ragged flat tail (B % 64 != 0).
    xf = x.astype(jnp.float32).reshape(-1)
    if total != n:
        xf = jnp.pad(xf, (0, total - n))
    x2 = xf.reshape(rows, 128)

    # Tiny lane-replicated parameter tables, VMEM-resident across the grid.
    wl = jnp.tile(W1.astype(jnp.float32), (1, 64))                        # (10, 128)
    bl = jnp.tile(b1.astype(jnp.float32).reshape(10, 1), (1, 128))        # (10, 128)
    dw = (W2[1, :] - W2[0, :]).astype(jnp.float32)                        # fc2 logit-diff
    dwl = jnp.tile(dw.reshape(10, 1), (1, 128))                           # (10, 128)
    dbl = jnp.full((1, 128), (b2[1] - b2[0]).astype(jnp.float32))         # (1, 128)

    # Big tiles (amortize per-step overhead), multiple of 8 sublanes, and at
    # least 2 grid steps when possible so both v7x TensorCores get work.
    if rows <= 8:
        tile = rows
    else:
        tile = min(_round_up(block_rows, 8), _round_up(pl.cdiv(rows, 2), 8))
    grid = (pl.cdiv(rows, tile),)

    cost = pl.CostEstimate(
        flops=int(total * 72),                 # 10 hidden units x ~7 VPU ops / lane
        transcendentals=int(total),            # one exp per output element
        bytes_accessed=int(total * 8 + 4 * (3 * 10 * 128 + 128)),
    )

    out2 = pl.pallas_call(
        mlp_kernel,
        out_shape=jax.ShapeDtypeStruct((rows, 128), jnp.float32),
        grid_spec=pltpu.PrefetchScalarGridSpec(
            num_scalar_prefetch=0,
            grid=grid,
            in_specs=[
                pl.BlockSpec((tile, 128), lambda i: (i, 0)),   # x block (interleaved lanes)
                pl.BlockSpec((10, 128), lambda i: (0, 0)),     # fc1 weight lane table
                pl.BlockSpec((10, 128), lambda i: (0, 0)),     # fc1 bias
                pl.BlockSpec((10, 128), lambda i: (0, 0)),     # fc2 logit-diff weights
                pl.BlockSpec((1, 128), lambda i: (0, 0)),      # fc2 logit-diff bias
            ],
            out_specs=pl.BlockSpec((tile, 128), lambda i: (i, 0)),
        ),
        compiler_params=pltpu.CompilerParams(
            dimension_semantics=("parallel",),       # shard batch blocks across TCs
            vmem_limit_bytes=32 * 1024 * 1024,       # safe on v5e/v6e/v7x
        ),
        cost_estimate=cost,
    )(x2, wl, bl, dwl, dbl)

    out = out2.reshape(-1)
    if total != n:
        out = out[:n]
    return out.reshape(B, 2)


def init_params(key):
    # Mimic torch's default U(-1/sqrt(fan_in), 1/sqrt(fan_in)), torch layouts.
    k1, k2, k3, k4 = jax.random.split(key, 4)
    lim1 = 1.0 / jnp.sqrt(2.0)
    lim2 = 1.0 / jnp.sqrt(10.0)
    W1 = jax.random.uniform(k1, (10, 2), jnp.float32, -lim1, lim1)   # fc1.weight
    b1 = jax.random.uniform(k2, (10,), jnp.float32, -lim1, lim1)     # fc1.bias
    W2 = jax.random.uniform(k3, (2, 10), jnp.float32, -lim2, lim2)   # fc2.weight
    b2 = jax.random.uniform(k4, (2,), jnp.float32, -lim2, lim2)      # fc2.bias
    return W1, b1, W2, b2


def _reference(x, W1, b1, W2, b2):
    h = jnp.maximum(x @ W1.T + b1, 0.0)
    z = h @ W2.T + b2
    return jax.nn.softmax(z, axis=1)


if __name__ == "__main__":
    key = jax.random.PRNGKey(0)
    kx1, kx2, kx3, kp = jax.random.split(key, 4)
    W1, b1, W2, b2 = init_params(kp)

    # 1) Lane-aligned batch (B % 64 == 0 -> fully copy-free wrapper path).
    B1 = 128
    x1 = jax.random.normal(kx1, (B1, 2), jnp.float32)
    out1 = jax.block_until_ready(simple_model_forward(x1, W1, b1, W2, b2))
    assert out1.shape == (B1, 2)
    assert jnp.allclose(jnp.sum(out1, axis=1), 1.0, atol=1e-5)
    assert jnp.allclose(out1, _reference(x1, W1, b1, W2, b2), atol=1e-5)

    # 2) Ragged batch (B % 64 != 0 -> padded flat tail), single block.
    B2 = 300
    x2 = jax.random.normal(kx2, (B2, 2), jnp.float32)
    out2 = jax.block_until_ready(simple_model_forward(x2, W1, b1, W2, b2))
    assert out2.shape == (B2, 2)
    assert jnp.allclose(jnp.sum(out2, axis=1), 1.0, atol=1e-5)
    assert jnp.allclose(out2, _reference(x2, W1, b1, W2, b2), atol=1e-5)

    # 3) Multi-step grid with a ragged final block (forced small block_rows).
    B3 = 3000
    x3 = jax.random.normal(kx3, (B3, 2), jnp.float32)
    out3 = jax.block_until_ready(
        simple_model_forward(x3, W1, b1, W2, b2, block_rows=8))
    assert out3.shape == (B3, 2)
    assert jnp.allclose(jnp.sum(out3, axis=1), 1.0, atol=1e-5)
    assert jnp.allclose(out3, _reference(x3, W1, b1, W2, b2), atol=1e-5)

    print("KERNEL_OK")
</pallas_src>

<mosaic_0001>
module attributes {stable_mosaic.version = 11 : i64} {
  func.func @mlp_kernel(%arg0: i32, %arg1: memref<2x128xf32, #tpu.memory_space<vmem>>, %arg2: memref<10x128xf32, #tpu.memory_space<vmem>>, %arg3: memref<10x128xf32, #tpu.memory_space<vmem>>, %arg4: memref<10x128xf32, #tpu.memory_space<vmem>>, %arg5: memref<1x128xf32, #tpu.memory_space<vmem>>, %arg6: memref<2x128xf32, #tpu.memory_space<vmem>>) attributes {dimension_semantics = [#tpu.dimension_semantics<parallel>], iteration_bounds = array<i64: 1>, scalar_prefetch = 0 : i64, scratch_operands = 0 : i64, tpu.core_type = #tpu.core_type<tc>, window_params = [{transform_indices = @transform_0, window_bounds = array<i64: 2, 128>}, {pipeline_mode = #tpu.pipeline_mode<synchronous>, transform_indices = @transform_1, window_bounds = array<i64: 10, 128>}, {pipeline_mode = #tpu.pipeline_mode<synchronous>, transform_indices = @transform_2, window_bounds = array<i64: 10, 128>}, {pipeline_mode = #tpu.pipeline_mode<synchronous>, transform_indices = @transform_3, window_bounds = array<i64: 10, 128>}, {pipeline_mode = #tpu.pipeline_mode<synchronous>, transform_indices = @transform_4, window_bounds = array<i64: 1, 128>}, {transform_indices = @transform_5, window_bounds = array<i64: 2, 128>}]} {
    %c0 = arith.constant 0 : index
    %c0_0 = arith.constant 0 : index
    %0 = vector.load %arg1[%c0, %c0_0] : memref<2x128xf32, #tpu.memory_space<vmem>>, vector<2x128xf32>
    %1 = tpu.iota {dimensions = array<i32: 1>} : vector<1x128xi32>
    %c1_i32 = arith.constant 1 : i32
    %2 = vector.broadcast %c1_i32 : i32 to vector<1x128xi32>
    %3 = arith.andi %1, %2 : vector<1x128xi32>
    %c0_i32 = arith.constant 0 : i32
    %4 = vector.broadcast %c0_i32 : i32 to vector<1x128xi32>
    %5 = arith.cmpi eq, %3, %4 : vector<1x128xi32>
    %cst = arith.constant 0.000000e+00 : f32
    %6 = vector.broadcast %cst : f32 to vector<2x128xf32>
    %c0_1 = arith.constant 0 : index
    %c0_2 = arith.constant 0 : index
    %7 = vector.load %arg2[%c0_1, %c0_2] : memref<10x128xf32, #tpu.memory_space<vmem>>, vector<1x128xf32>
    %8 = vector.broadcast %7 : vector<1x128xf32> to vector<2x128xf32>
    %9 = arith.mulf %0, %8 : vector<2x128xf32>
    %c127_i32 = arith.constant 127 : i32
    %10 = tpu.dynamic_rotate %9 by %c127_i32 dim 1 : vector<2x128xf32>, i32 -> vector<2x128xf32>
    %11 = arith.addf %9, %10 : vector<2x128xf32>
    %c0_3 = arith.constant 0 : index
    %c0_4 = arith.constant 0 : index
    %12 = vector.load %arg3[%c0_3, %c0_4] : memref<10x128xf32, #tpu.memory_space<vmem>>, vector<1x128xf32>
    %13 = vector.broadcast %12 : vector<1x128xf32> to vector<2x128xf32>
    %14 = arith.addf %11, %13 : vector<2x128xf32>
    %cst_5 = arith.constant 0.000000e+00 : f32
    %15 = vector.broadcast %cst_5 : f32 to vector<2x128xf32>
    %16 = arith.maximumf %14, %15 : vector<2x128xf32>
    %c0_6 = arith.constant 0 : index
    %c0_7 = arith.constant 0 : index
    %17 = vector.load %arg4[%c0_6, %c0_7] : memref<10x128xf32, #tpu.memory_space<vmem>>, vector<1x128xf32>
    %18 = vector.broadcast %17 : vector<1x128xf32> to vector<2x128xf32>
    %19 = arith.mulf %18, %16 : vector<2x128xf32>
    %20 = arith.addf %6, %19 : vector<2x128xf32>
    %c1 = arith.constant 1 : index
    %c0_8 = arith.constant 0 : index
    %21 = vector.load %arg2[%c1, %c0_8] : memref<10x128xf32, #tpu.memory_space<vmem>>, vector<1x128xf32>
    %22 = vector.broadcast %21 : vector<1x128xf32> to vector<2x128xf32>
    %23 = arith.mulf %0, %22 : vector<2x128xf32>
    %c127_i32_9 = arith.constant 127 : i32
    %24 = tpu.dynamic_rotate %23 by %c127_i32_9 dim 1 : vector<2x128xf32>, i32 -> vector<2x128xf32>
    %25 = arith.addf %23, %24 : vector<2x128xf32>
    %c1_10 = arith.constant 1 : index
    %c0_11 = arith.constant 0 : index
    %26 = vector.load %arg3[%c1_10, %c0_11] : memref<10x128xf32, #tpu.memory_space<vmem>>, vector<1x128xf32>
    %27 = vector.broadcast %26 : vector<1x128xf32> to vector<2x128xf32>
    %28 = arith.addf %25, %27 : vector<2x128xf32>
    %cst_12 = arith.constant 0.000000e+00 : f32
    %29 = vector.broadcast %cst_12 : f32 to vector<2x128xf32>
    %30 = arith.maximumf %28, %29 : vector<2x128xf32>
    %c1_13 = arith.constant 1 : index
    %c0_14 = arith.constant 0 : index
    %31 = vector.load %arg4[%c1_13, %c0_14] : memref<10x128xf32, #tpu.memory_space<vmem>>, vector<1x128xf32>
    %32 = vector.broadcast %31 : vector<1x128xf32> to vector<2x128xf32>
    %33 = arith.mulf %32, %30 : vector<2x128xf32>
    %34 = arith.addf %20, %33 : vector<2x128xf32>
    %c2 = arith.constant 2 : index
    %c0_15 = arith.constant 0 : index
    %35 = vector.load %arg2[%c2, %c0_15] : memref<10x128xf32, #tpu.memory_space<vmem>>, vector<1x128xf32>
    %36 = vector.broadcast %35 : vector<1x128xf32> to vector<2x128xf32>
    %37 = arith.mulf %0, %36 : vector<2x128xf32>
    %c127_i32_16 = arith.constant 127 : i32
    %38 = tpu.dynamic_rotate %37 by %c127_i32_16 dim 1 : vector<2x128xf32>, i32 -> vector<2x128xf32>
    %39 = arith.addf %37, %38 : vector<2x128xf32>
    %c2_17 = arith.constant 2 : index
    %c0_18 = arith.constant 0 : index
    %40 = vector.load %arg3[%c2_17, %c0_18] : memref<10x128xf32, #tpu.memory_space<vmem>>, vector<1x128xf32>
    %41 = vector.broadcast %40 : vector<1x128xf32> to vector<2x128xf32>
    %42 = arith.addf %39, %41 : vector<2x128xf32>
    %cst_19 = arith.constant 0.000000e+00 : f32
    %43 = vector.broadcast %cst_19 : f32 to vector<2x128xf32>
    %44 = arith.maximumf %42, %43 : vector<2x128xf32>
    %c2_20 = arith.constant 2 : index
    %c0_21 = arith.constant 0 : index
    %45 = vector.load %arg4[%c2_20, %c0_21] : memref<10x128xf32, #tpu.memory_space<vmem>>, vector<1x128xf32>
    %46 = vector.broadcast %45 : vector<1x128xf32> to vector<2x128xf32>
    %47 = arith.mulf %46, %44 : vector<2x128xf32>
    %48 = arith.addf %34, %47 : vector<2x128xf32>
    %c3 = arith.constant 3 : index
    %c0_22 = arith.constant 0 : index
    %49 = vector.load %arg2[%c3, %c0_22] : memref<10x128xf32, #tpu.memory_space<vmem>>, vector<1x128xf32>
    %50 = vector.broadcast %49 : vector<1x128xf32> to vector<2x128xf32>
    %51 = arith.mulf %0, %50 : vector<2x128xf32>
    %c127_i32_23 = arith.constant 127 : i32
    %52 = tpu.dynamic_rotate %51 by %c127_i32_23 dim 1 : vector<2x128xf32>, i32 -> vector<2x128xf32>
    %53 = arith.addf %51, %52 : vector<2x128xf32>
    %c3_24 = arith.constant 3 : index
    %c0_25 = arith.constant 0 : index
    %54 = vector.load %arg3[%c3_24, %c0_25] : memref<10x128xf32, #tpu.memory_space<vmem>>, vector<1x128xf32>
    %55 = vector.broadcast %54 : vector<1x128xf32> to vector<2x128xf32>
    %56 = arith.addf %53, %55 : vector<2x128xf32>
    %cst_26 = arith.constant 0.000000e+00 : f32
    %57 = vector.broadcast %cst_26 : f32 to vector<2x128xf32>
    %58 = arith.maximumf %56, %57 : vector<2x128xf32>
    %c3_27 = arith.constant 3 : index
    %c0_28 = arith.constant 0 : index
    %59 = vector.load %arg4[%c3_27, %c0_28] : memref<10x128xf32, #tpu.memory_space<vmem>>, vector<1x128xf32>
    %60 = vector.broadcast %59 : vector<1x128xf32> to vector<2x128xf32>
    %61 = arith.mulf %60, %58 : vector<2x128xf32>
    %62 = arith.addf %48, %61 : vector<2x128xf32>
    %c4 = arith.constant 4 : index
    %c0_29 = arith.constant 0 : index
    %63 = vector.load %arg2[%c4, %c0_29] : memref<10x128xf32, #tpu.memory_space<vmem>>, vector<1x128xf32>
    %64 = vector.broadcast %63 : vector<1x128xf32> to vector<2x128xf32>
    %65 = arith.mulf %0, %64 : vector<2x128xf32>
    %c127_i32_30 = arith.constant 127 : i32
    %66 = tpu.dynamic_rotate %65 by %c127_i32_30 dim 1 : vector<2x128xf32>, i32 -> vector<2x128xf32>
    %67 = arith.addf %65, %66 : vector<2x128xf32>
    %c4_31 = arith.constant 4 : index
    %c0_32 = arith.constant 0 : index
    %68 = vector.load %arg3[%c4_31, %c0_32] : memref<10x128xf32, #tpu.memory_space<vmem>>, vector<1x128xf32>
    %69 = vector.broadcast %68 : vector<1x128xf32> to vector<2x128xf32>
    %70 = arith.addf %67, %69 : vector<2x128xf32>
    %cst_33 = arith.constant 0.000000e+00 : f32
    %71 = vector.broadcast %cst_33 : f32 to vector<2x128xf32>
    %72 = arith.maximumf %70, %71 : vector<2x128xf32>
    %c4_34 = arith.constant 4 : index
    %c0_35 = arith.constant 0 : index
    %73 = vector.load %arg4[%c4_34, %c0_35] : memref<10x128xf32, #tpu.memory_space<vmem>>, vector<1x128xf32>
    %74 = vector.broadcast %73 : vector<1x128xf32> to vector<2x128xf32>
    %75 = arith.mulf %74, %72 : vector<2x128xf32>
    %76 = arith.addf %62, %75 : vector<2x128xf32>
    %c5 = arith.constant 5 : index
    %c0_36 = arith.constant 0 : index
    %77 = vector.load %arg2[%c5, %c0_36] : memref<10x128xf32, #tpu.memory_space<vmem>>, vector<1x128xf32>
    %78 = vector.broadcast %77 : vector<1x128xf32> to vector<2x128xf32>
    %79 = arith.mulf %0, %78 : vector<2x128xf32>
    %c127_i32_37 = arith.constant 127 : i32
    %80 = tpu.dynamic_rotate %79 by %c127_i32_37 dim 1 : vector<2x128xf32>, i32 -> vector<2x128xf32>
    %81 = arith.addf %79, %80 : vector<2x128xf32>
    %c5_38 = arith.constant 5 : index
    %c0_39 = arith.constant 0 : index
    %82 = vector.load %arg3[%c5_38, %c0_39] : memref<10x128xf32, #tpu.memory_space<vmem>>, vector<1x128xf32>
    %83 = vector.broadcast %82 : vector<1x128xf32> to vector<2x128xf32>
    %84 = arith.addf %81, %83 : vector<2x128xf32>
    %cst_40 = arith.constant 0.000000e+00 : f32
    %85 = vector.broadcast %cst_40 : f32 to vector<2x128xf32>
    %86 = arith.maximumf %84, %85 : vector<2x128xf32>
    %c5_41 = arith.constant 5 : index
    %c0_42 = arith.constant 0 : index
    %87 = vector.load %arg4[%c5_41, %c0_42] : memref<10x128xf32, #tpu.memory_space<vmem>>, vector<1x128xf32>
    %88 = vector.broadcast %87 : vector<1x128xf32> to vector<2x128xf32>
    %89 = arith.mulf %88, %86 : vector<2x128xf32>
    %90 = arith.addf %76, %89 : vector<2x128xf32>
    %c6 = arith.constant 6 : index
    %c0_43 = arith.constant 0 : index
    %91 = vector.load %arg2[%c6, %c0_43] : memref<10x128xf32, #tpu.memory_space<vmem>>, vector<1x128xf32>
    %92 = vector.broadcast %91 : vector<1x128xf32> to vector<2x128xf32>
    %93 = arith.mulf %0, %92 : vector<2x128xf32>
    %c127_i32_44 = arith.constant 127 : i32
    %94 = tpu.dynamic_rotate %93 by %c127_i32_44 dim 1 : vector<2x128xf32>, i32 -> vector<2x128xf32>
    %95 = arith.addf %93, %94 : vector<2x128xf32>
    %c6_45 = arith.constant 6 : index
    %c0_46 = arith.constant 0 : index
    %96 = vector.load %arg3[%c6_45, %c0_46] : memref<10x128xf32, #tpu.memory_space<vmem>>, vector<1x128xf32>
    %97 = vector.broadcast %96 : vector<1x128xf32> to vector<2x128xf32>
    %98 = arith.addf %95, %97 : vector<2x128xf32>
    %cst_47 = arith.constant 0.000000e+00 : f32
    %99 = vector.broadcast %cst_47 : f32 to vector<2x128xf32>
    %100 = arith.maximumf %98, %99 : vector<2x128xf32>
    %c6_48 = arith.constant 6 : index
    %c0_49 = arith.constant 0 : index
    %101 = vector.load %arg4[%c6_48, %c0_49] : memref<10x128xf32, #tpu.memory_space<vmem>>, vector<1x128xf32>
    %102 = vector.broadcast %101 : vector<1x128xf32> to vector<2x128xf32>
    %103 = arith.mulf %102, %100 : vector<2x128xf32>
    %104 = arith.addf %90, %103 : vector<2x128xf32>
    %c7 = arith.constant 7 : index
    %c0_50 = arith.constant 0 : index
    %105 = vector.load %arg2[%c7, %c0_50] : memref<10x128xf32, #tpu.memory_space<vmem>>, vector<1x128xf32>
    %106 = vector.broadcast %105 : vector<1x128xf32> to vector<2x128xf32>
    %107 = arith.mulf %0, %106 : vector<2x128xf32>
    %c127_i32_51 = arith.constant 127 : i32
    %108 = tpu.dynamic_rotate %107 by %c127_i32_51 dim 1 : vector<2x128xf32>, i32 -> vector<2x128xf32>
    %109 = arith.addf %107, %108 : vector<2x128xf32>
    %c7_52 = arith.constant 7 : index
    %c0_53 = arith.constant 0 : index
    %110 = vector.load %arg3[%c7_52, %c0_53] : memref<10x128xf32, #tpu.memory_space<vmem>>, vector<1x128xf32>
    %111 = vector.broadcast %110 : vector<1x128xf32> to vector<2x128xf32>
    %112 = arith.addf %109, %111 : vector<2x128xf32>
    %cst_54 = arith.constant 0.000000e+00 : f32
    %113 = vector.broadcast %cst_54 : f32 to vector<2x128xf32>
    %114 = arith.maximumf %112, %113 : vector<2x128xf32>
    %c7_55 = arith.constant 7 : index
    %c0_56 = arith.constant 0 : index
    %115 = vector.load %arg4[%c7_55, %c0_56] : memref<10x128xf32, #tpu.memory_space<vmem>>, vector<1x128xf32>
    %116 = vector.broadcast %115 : vector<1x128xf32> to vector<2x128xf32>
    %117 = arith.mulf %116, %114 : vector<2x128xf32>
    %118 = arith.addf %104, %117 : vector<2x128xf32>
    %c8 = arith.constant 8 : index
    %c0_57 = arith.constant 0 : index
    %119 = vector.load %arg2[%c8, %c0_57] : memref<10x128xf32, #tpu.memory_space<vmem>>, vector<1x128xf32>
    %120 = vector.broadcast %119 : vector<1x128xf32> to vector<2x128xf32>
    %121 = arith.mulf %0, %120 : vector<2x128xf32>
    %c127_i32_58 = arith.constant 127 : i32
    %122 = tpu.dynamic_rotate %121 by %c127_i32_58 dim 1 : vector<2x128xf32>, i32 -> vector<2x128xf32>
    %123 = arith.addf %121, %122 : vector<2x128xf32>
    %c8_59 = arith.constant 8 : index
    %c0_60 = arith.constant 0 : index
    %124 = vector.load %arg3[%c8_59, %c0_60] : memref<10x128xf32, #tpu.memory_space<vmem>>, vector<1x128xf32>
    %125 = vector.broadcast %124 : vector<1x128xf32> to vector<2x128xf32>
    %126 = arith.addf %123, %125 : vector<2x128xf32>
    %cst_61 = arith.constant 0.000000e+00 : f32
    %127 = vector.broadcast %cst_61 : f32 to vector<2x128xf32>
    %128 = arith.maximumf %126, %127 : vector<2x128xf32>
    %c8_62 = arith.constant 8 : index
    %c0_63 = arith.constant 0 : index
    %129 = vector.load %arg4[%c8_62, %c0_63] : memref<10x128xf32, #tpu.memory_space<vmem>>, vector<1x128xf32>
    %130 = vector.broadcast %129 : vector<1x128xf32> to vector<2x128xf32>
    %131 = arith.mulf %130, %128 : vector<2x128xf32>
    %132 = arith.addf %118, %131 : vector<2x128xf32>
    %c9 = arith.constant 9 : index
    %c0_64 = arith.constant 0 : index
    %133 = vector.load %arg2[%c9, %c0_64] : memref<10x128xf32, #tpu.memory_space<vmem>>, vector<1x128xf32>
    %134 = vector.broadcast %133 : vector<1x128xf32> to vector<2x128xf32>
    %135 = arith.mulf %0, %134 : vector<2x128xf32>
    %c127_i32_65 = arith.constant 127 : i32
    %136 = tpu.dynamic_rotate %135 by %c127_i32_65 dim 1 : vector<2x128xf32>, i32 -> vector<2x128xf32>
    %137 = arith.addf %135, %136 : vector<2x128xf32>
    %c9_66 = arith.constant 9 : index
    %c0_67 = arith.constant 0 : index
    %138 = vector.load %arg3[%c9_66, %c0_67] : memref<10x128xf32, #tpu.memory_space<vmem>>, vector<1x128xf32>
    %139 = vector.broadcast %138 : vector<1x128xf32> to vector<2x128xf32>
    %140 = arith.addf %137, %139 : vector<2x128xf32>
    %cst_68 = arith.constant 0.000000e+00 : f32
    %141 = vector.broadcast %cst_68 : f32 to vector<2x128xf32>
    %142 = arith.maximumf %140, %141 : vector<2x128xf32>
    %c9_69 = arith.constant 9 : index
    %c0_70 = arith.constant 0 : index
    %143 = vector.load %arg4[%c9_69, %c0_70] : memref<10x128xf32, #tpu.memory_space<vmem>>, vector<1x128xf32>
    %144 = vector.broadcast %143 : vector<1x128xf32> to vector<2x128xf32>
    %145 = arith.mulf %144, %142 : vector<2x128xf32>
    %146 = arith.addf %132, %145 : vector<2x128xf32>
    %c0_71 = arith.constant 0 : index
    %c0_72 = arith.constant 0 : index
    %147 = vector.load %arg5[%c0_71, %c0_72] : memref<1x128xf32, #tpu.memory_space<vmem>>, vector<1x128xf32>
    %148 = vector.broadcast %147 : vector<1x128xf32> to vector<2x128xf32>
    %149 = arith.addf %146, %148 : vector<2x128xf32>
    %c1_i32_73 = arith.constant 1 : i32
    %150 = tpu.dynamic_rotate %149 by %c1_i32_73 dim 1 : vector<2x128xf32>, i32 -> vector<2x128xf32>
    %151 = vector.shape_cast %5 : vector<1x128xi1> to vector<1x128xi1>
    %152 = vector.broadcast %151 : vector<1x128xi1> to vector<2x128xi1>
    %153 = arith.select %152, %149, %150 : vector<2x128xi1>, vector<2x128xf32>
    %cst_74 = arith.constant 0.000000e+00 : f32
    %154 = vector.broadcast %cst_74 : f32 to vector<2x128xf32>
    %155 = arith.subf %154, %153 : vector<2x128xf32>
    %156 = vector.shape_cast %5 : vector<1x128xi1> to vector<1x128xi1>
    %157 = vector.broadcast %156 : vector<1x128xi1> to vector<2x128xi1>
    %158 = arith.select %157, %153, %155 : vector<2x128xi1>, vector<2x128xf32>
    %159 = math.exp %158 : vector<2x128xf32>
    %cst_75 = arith.constant 1.000000e+00 : f32
    %160 = vector.broadcast %cst_75 : f32 to vector<2x128xf32>
    %161 = arith.addf %160, %159 : vector<2x128xf32>
    %cst_76 = arith.constant 1.000000e+00 : f32
    %162 = vector.broadcast %cst_76 : f32 to vector<2x128xf32>
    %163 = arith.divf %162, %161 : vector<2x128xf32>
    %c0_77 = arith.constant 0 : index
    %c0_78 = arith.constant 0 : index
    %164 = vector.load %arg6[%c0_77, %c0_78] : memref<2x128xf32, #tpu.memory_space<vmem>>, vector<2x128xf32>
    tpu.vector_store %arg6[%c0_77, %c0_78], %163 {strides = array<i32>} : memref<2x128xf32, #tpu.memory_space<vmem>>, vector<2x128xf32>,
    return
  }
  func.func @transform_0(%arg0: i32) -> (i32, i32) {
    %c0_i32 = arith.constant 0 : i32
    %c0_i32_0 = arith.constant 0 : i32
    return %arg0, %c0_i32 : i32, i32
  }
  func.func @transform_1(%arg0: i32) -> (i32, i32) {
    %c0_i32 = arith.constant 0 : i32
    %c0_i32_0 = arith.constant 0 : i32
    %c0_i32_1 = arith.constant 0 : i32
    return %c0_i32, %c0_i32_0 : i32, i32
  }
  func.func @transform_2(%arg0: i32) -> (i32, i32) {
    %c0_i32 = arith.constant 0 : i32
    %c0_i32_0 = arith.constant 0 : i32
    %c0_i32_1 = arith.constant 0 : i32
    return %c0_i32, %c0_i32_0 : i32, i32
  }
  func.func @transform_3(%arg0: i32) -> (i32, i32) {
    %c0_i32 = arith.constant 0 : i32
    %c0_i32_0 = arith.constant 0 : i32
    %c0_i32_1 = arith.constant 0 : i32
    return %c0_i32, %c0_i32_0 : i32, i32
  }
  func.func @transform_4(%arg0: i32) -> (i32, i32) {
    %c0_i32 = arith.constant 0 : i32
    %c0_i32_0 = arith.constant 0 : i32
    %c0_i32_1 = arith.constant 0 : i32
    return %c0_i32, %c0_i32_0 : i32, i32
  }
  func.func @transform_5(%arg0: i32) -> (i32, i32) {
    %c0_i32 = arith.constant 0 : i32
    %c0_i32_0 = arith.constant 0 : i32
    return %arg0, %c0_i32 : i32, i32
  }
}

</mosaic_0001>

<llo_original>
// kernel: tpu_custom_call.1
$region0: #{tpu_custom_call.1}
  #allocation0 [shape = 'u32[]', space=smem, size = 0x4, offset = 0x4, fixed_abs, tag = 'smem constant byte address 0x4 - core index']
  #allocation1 [shape = 'u32[72,128]{1,0:T(1,128)}', space=vmem, size = 0x9000, scoped, tag = 'internal scratch']
  %s0 = inlined_call_operand.hbm [shape: f32[2,128], index: 0, kind: input, shape index: {}]
  %s1 = inlined_call_operand.hbm [shape: f32[10,128], index: 1, kind: input, shape index: {}]
  %s2 = inlined_call_operand.hbm [shape: f32[10,128], index: 2, kind: input, shape index: {}]
  %s3 = inlined_call_operand.hbm [shape: f32[10,128], index: 3, kind: input, shape index: {}]
  %s4 = inlined_call_operand.vmem [shape: f32[1,128], index: 4, kind: input, shape index: {}]
  %s5 = inlined_call_operand.hbm [shape: f32[2,128], index: 5, kind: output, shape index: {}]
  %s6 = sld [smem:[#allocation0]]
  $region46: #{tpu_custom_call.1} parent=0
    _
  %s8 = ssub.s32 1, %s6
  %s9 = scalar_select 0, %s8, %s6
  $region1: #{tpu_custom_call.1} parent=0
    #allocation2 [shape = 'u8[1024]{0}', space=vmem, size = 0x400, scoped, tag = 'input window, operand 0, single buffered']
    #allocation3 [shape = 's32[1]{0}', space=sflag, size = 0x4, scoped, tag = 'scoped memory for tpu_custom_call.1']
    #allocation4 [shape = 's32[1]{0}', space=sflag, size = 0x4, scoped, tag = 'scoped memory for tpu_custom_call.1']
    #allocation5 [shape = 'u8[8192]{0}', space=vmem, size = 0x2000, scoped, tag = 'input window, operand 1, single buffered']
    #allocation6 [shape = 's32[1]{0}', space=sflag, size = 0x4, scoped, tag = 'scoped memory for tpu_custom_call.1']
    #allocation7 [shape = 'u8[8192]{0}', space=vmem, size = 0x2000, scoped, tag = 'input window, operand 2, single buffered']
    #allocation8 [shape = 'u8[8192]{0}', space=vmem, size = 0x2000, scoped, tag = 'input window, operand 3, single buffered']
    #allocation9 [shape = 's32[1]{0}', space=sflag, size = 0x4, scoped, tag = 'scoped memory for tpu_custom_call.1']
    #allocation10 [shape = 'u8[1024]{0}', space=vmem, size = 0x400, scoped, tag = 'output window, operand 0, single buffered']
    %10 = vsyncpa [#allocation3], 0
    %11 = vsyncpa [#allocation6], 0
    %12 = vsyncpa [#allocation9], 0
    %13 = vsyncpa [#allocation4], 0
    // Predicated region
    $region2: #{tpu_custom_call.1} parent=1 // pred_check
      _
    $region3: #{tpu_custom_call.1} parent=1 // pred_check_branch
      %15 = sbr.rel (0) target = $region5
    $region4: #{tpu_custom_call.1} parent=1 // pred_region
      %17 = vsyncadd [#allocation3], 0
      %s19 = sshll.u32 %s0, 4
      %s20 = int_to_ptr.hbm [resolvable:$true] %s19
      %s21 = sshll.u32 [#allocation2], 4
      %s22 = int_to_ptr.vmem [resolvable:$true] %s21
      %24 = dma.hbm_to_vmem [thread:$0]  %s20, 32, %s22, [#allocation3]
    $region5: #{tpu_custom_call.1} parent=1 // pred_fallthru
      _
    // Predicated region
    $region6: #{tpu_custom_call.1} parent=1 // pred_check
      _
    $region7: #{tpu_custom_call.1} parent=1 // pred_check_branch
      %26 = sbr.rel (0) target = $region9
    $region8: #{tpu_custom_call.1} parent=1 // pred_region
      %28 = vsyncadd [#allocation6], 0
      %s29 = sshll.u32 %s1, 4
      %s30 = int_to_ptr.hbm [resolvable:$true] %s29
      %s31 = sshll.u32 [#allocation5], 4
      %s32 = int_to_ptr.vmem [resolvable:$true] %s31
      %37 = dma.hbm_to_vmem [thread:$0]  %s30, 256, %s32, [#allocation6], 128, 128, 8
    $region9: #{tpu_custom_call.1} parent=1 // pred_fallthru
      _
    // Predicated region
    $region10: #{tpu_custom_call.1} parent=1 // pred_check
      _
    $region11: #{tpu_custom_call.1} parent=1 // pred_check_branch
      %39 = sbr.rel (0) target = $region13
    $region12: #{tpu_custom_call.1} parent=1 // pred_region
      %41 = vsyncadd [#allocation6], 0
      %s42 = sshll.u32 %s2, 4
      %s43 = int_to_ptr.hbm [resolvable:$true] %s42
      %s44 = sshll.u32 [#allocation7], 4
      %s45 = int_to_ptr.vmem [resolvable:$true] %s44
      %50 = dma.hbm_to_vmem [thread:$0]  %s43, 256, %s45, [#allocation6], 128, 128, 8
    $region13: #{tpu_custom_call.1} parent=1 // pred_fallthru
      _
    // Predicated region
    $region14: #{tpu_custom_call.1} parent=1 // pred_check
      _
    $region15: #{tpu_custom_call.1} parent=1 // pred_check_branch
      %52 = sbr.rel (0) target = $region17
    $region16: #{tpu_custom_call.1} parent=1 // pred_region
      %54 = vsyncadd [#allocation9], 0
      %s55 = sshll.u32 %s3, 4
      %s56 = int_to_ptr.hbm [resolvable:$true] %s55
      %s57 = sshll.u32 [#allocation8], 4
      %s58 = int_to_ptr.vmem [resolvable:$true] %s57
      %63 = dma.hbm_to_vmem [thread:$0]  %s56, 256, %s58, [#allocation9], 128, 128, 8
    $region17: #{tpu_custom_call.1} parent=1 // pred_fallthru
      _
    // Predicated region
    $region18: #{tpu_custom_call.1} parent=1 // pred_check
      _
    $region19: #{tpu_custom_call.1} parent=1 // pred_check_branch
      %65 = sbr.rel (0) target = $region21
    $region20: #{tpu_custom_call.1} parent=1 // pred_region
      _
    $region21: #{tpu_custom_call.1} parent=1 // pred_fallthru
      _
    // Predicated region
    $region22: #{tpu_custom_call.1} parent=1 // pred_check
      _
    $region23: #{tpu_custom_call.1} parent=1 // pred_check_branch
      %67 = sbr.rel (0) target = $region25
    $region24: #{tpu_custom_call.1} parent=1 // pred_region
      %69 = dma.done [#allocation3], 32
    $region25: #{tpu_custom_call.1} parent=1 // pred_fallthru
      _
    // Predicated region
    $region26: #{tpu_custom_call.1} parent=1 // pred_check
      _
    $region27: #{tpu_custom_call.1} parent=1 // pred_check_branch
      %71 = sbr.rel (0) target = $region29
    $region28: #{tpu_custom_call.1} parent=1 // pred_region
      %73 = dma.done [#allocation6], 256
    $region29: #{tpu_custom_call.1} parent=1 // pred_fallthru
      _
    // Predicated region
    $region30: #{tpu_custom_call.1} parent=1 // pred_check
      _
    $region31: #{tpu_custom_call.1} parent=1 // pred_check_branch
      %75 = sbr.rel (0) target = $region33
    $region32: #{tpu_custom_call.1} parent=1 // pred_region
      %77 = dma.done [#allocation6], 256
    $region33: #{tpu_custom_call.1} parent=1 // pred_fallthru
      _
    // Predicated region
    $region34: #{tpu_custom_call.1} parent=1 // pred_check
      _
    $region35: #{tpu_custom_call.1} parent=1 // pred_check_branch
      %79 = sbr.rel (0) target = $region37
    $region36: #{tpu_custom_call.1} parent=1 // pred_region
      %81 = dma.done [#allocation9], 256
    $region37: #{tpu_custom_call.1} parent=1 // pred_fallthru
      _
    %v82 = vld [vmem:[#allocation2] sm:$0x3]
    %v83 = vlaneseq
    %v84 = vand.u32 %v83, 127
    %v85 = vand.u32 %v84, 1
    %vm86 = vcmp.eq.s32.totalorder %v85, 0
    %v87 = vld [vmem:[#allocation5] sm:$0x1]
    %v88 = vperm.slane %v87, 0
    %v89 = vmul.f32 %v82, %v88
    %90 = vrot.lane.b32.xlu0 %v89, 127
    %v91 = vpop.permute.xlu0 %90
    %v92 = vadd.f32 %v89, %v91
    %v93 = vld [vmem:[#allocation7] sm:$0x1]
    %v94 = vperm.slane %v93, 0
    %v95 = vadd.f32 %v92, %v94
    %v96 = vmax.f32 %v95, 0.0
    %v97 = vld [vmem:[#allocation8] sm:$0x1]
    %v98 = vperm.slane %v97, 0
    %v99 = vmul.f32 %v98, %v96
    %v100 = vadd.f32 %v99, 0.0
    %v101 = vld [vmem:[#allocation5 + $0x1] sm:$0x1]
    %v102 = vperm.slane %v101, 0
    %v103 = vmul.f32 %v82, %v102
    %104 = vrot.lane.b32.xlu0 %v103, 127
    %v105 = vpop.permute.xlu0 %104
    %v106 = vadd.f32 %v103, %v105
    %v107 = vld [vmem:[#allocation7 + $0x1] sm:$0x1]
    %v108 = vperm.slane %v107, 0
    %v109 = vadd.f32 %v106, %v108
    %v110 = vmax.f32 %v109, 0.0
    %v111 = vld [vmem:[#allocation8 + $0x1] sm:$0x1]
    %v112 = vperm.slane %v111, 0
    %v113 = vmul.f32 %v112, %v110
    %v114 = vadd.f32 %v100, %v113
    %v115 = vld [vmem:[#allocation5 + $0x2] sm:$0x1]
    %v116 = vperm.slane %v115, 0
    %v117 = vmul.f32 %v82, %v116
    %118 = vrot.lane.b32.xlu0 %v117, 127
    %v119 = vpop.permute.xlu0 %118
    %v120 = vadd.f32 %v117, %v119
    %v121 = vld [vmem:[#allocation7 + $0x2] sm:$0x1]
    %v122 = vperm.slane %v121, 0
    %v123 = vadd.f32 %v120, %v122
    %v124 = vmax.f32 %v123, 0.0
    %v125 = vld [vmem:[#allocation8 + $0x2] sm:$0x1]
    %v126 = vperm.slane %v125, 0
    %v127 = vmul.f32 %v126, %v124
    %v128 = vadd.f32 %v114, %v127
    %v129 = vld [vmem:[#allocation5 + $0x3] sm:$0x1]
    %v130 = vperm.slane %v129, 0
    %v131 = vmul.f32 %v82, %v130
    %132 = vrot.lane.b32.xlu0 %v131, 127
    %v133 = vpop.permute.xlu0 %132
    %v134 = vadd.f32 %v131, %v133
    %v135 = vld [vmem:[#allocation7 + $0x3] sm:$0x1]
    %v136 = vperm.slane %v135, 0
    %v137 = vadd.f32 %v134, %v136
    %v138 = vmax.f32 %v137, 0.0
    %v139 = vld [vmem:[#allocation8 + $0x3] sm:$0x1]
    %v140 = vperm.slane %v139, 0
    %v141 = vmul.f32 %v140, %v138
    %v142 = vadd.f32 %v128, %v141
    %v143 = vld [vmem:[#allocation5 + $0x4] sm:$0x1]
    %v144 = vperm.slane %v143, 0
    %v145 = vmul.f32 %v82, %v144
    %146 = vrot.lane.b32.xlu0 %v145, 127
    %v147 = vpop.permute.xlu0 %146
    %v148 = vadd.f32 %v145, %v147
    %v149 = vld [vmem:[#allocation7 + $0x4] sm:$0x1]
    %v150 = vperm.slane %v149, 0
    %v151 = vadd.f32 %v148, %v150
    %v152 = vmax.f32 %v151, 0.0
    %v153 = vld [vmem:[#allocation8 + $0x4] sm:$0x1]
    %v154 = vperm.slane %v153, 0
    %v155 = vmul.f32 %v154, %v152
    %v156 = vadd.f32 %v142, %v155
    %v157 = vld [vmem:[#allocation5 + $0x5] sm:$0x1]
    %v158 = vperm.slane %v157, 0
    %v159 = vmul.f32 %v82, %v158
    %160 = vrot.lane.b32.xlu0 %v159, 127
    %v161 = vpop.permute.xlu0 %160
    %v162 = vadd.f32 %v159, %v161
    %v163 = vld [vmem:[#allocation7 + $0x5] sm:$0x1]
    %v164 = vperm.slane %v163, 0
    %v165 = vadd.f32 %v162, %v164
    %v166 = vmax.f32 %v165, 0.0
    %v167 = vld [vmem:[#allocation8 + $0x5] sm:$0x1]
    %v168 = vperm.slane %v167, 0
    %v169 = vmul.f32 %v168, %v166
    %v170 = vadd.f32 %v156, %v169
    %v171 = vld [vmem:[#allocation5 + $0x6] sm:$0x1]
    %v172 = vperm.slane %v171, 0
    %v173 = vmul.f32 %v82, %v172
    %174 = vrot.lane.b32.xlu0 %v173, 127
    %v175 = vpop.permute.xlu0 %174
    %v176 = vadd.f32 %v173, %v175
    %v177 = vld [vmem:[#allocation7 + $0x6] sm:$0x1]
    %v178 = vperm.slane %v177, 0
    %v179 = vadd.f32 %v176, %v178
    %v180 = vmax.f32 %v179, 0.0
    %v181 = vld [vmem:[#allocation8 + $0x6] sm:$0x1]
    %v182 = vperm.slane %v181, 0
    %v183 = vmul.f32 %v182, %v180
    %v184 = vadd.f32 %v170, %v183
    %v185 = vld [vmem:[#allocation5 + $0x7] sm:$0x1]
    %v186 = vperm.slane %v185, 0
    %v187 = vmul.f32 %v82, %v186
    %188 = vrot.lane.b32.xlu0 %v187, 127
    %v189 = vpop.permute.xlu0 %188
    %v190 = vadd.f32 %v187, %v189
    %v191 = vld [vmem:[#allocation7 + $0x7] sm:$0x1]
    %v192 = vperm.slane %v191, 0
    %v193 = vadd.f32 %v190, %v192
    %v194 = vmax.f32 %v193, 0.0
    %v195 = vld [vmem:[#allocation8 + $0x7] sm:$0x1]
    %v196 = vperm.slane %v195, 0
    %v197 = vmul.f32 %v196, %v194
    %v198 = vadd.f32 %v184, %v197
    %v199 = vld [vmem:[#allocation5 + $0x8] sm:$0x1]
    %v200 = vperm.slane %v199, 0
    %v201 = vmul.f32 %v82, %v200
    %202 = vrot.lane.b32.xlu0 %v201, 127
    %v203 = vpop.permute.xlu0 %202
    %v204 = vadd.f32 %v201, %v203
    %v205 = vld [vmem:[#allocation7 + $0x8] sm:$0x1]
    %v206 = vperm.slane %v205, 0
    %v207 = vadd.f32 %v204, %v206
    %v208 = vmax.f32 %v207, 0.0
    %v209 = vld [vmem:[#allocation8 + $0x8] sm:$0x1]
    %v210 = vperm.slane %v209, 0
    %v211 = vmul.f32 %v210, %v208
    %v212 = vadd.f32 %v198, %v211
    %v213 = vld [vmem:[#allocation5 + $0x9] sm:$0x1]
    %v214 = vperm.slane %v213, 0
    %v215 = vmul.f32 %v82, %v214
    %216 = vrot.lane.b32.xlu0 %v215, 127
    %v217 = vpop.permute.xlu0 %216
    %v218 = vadd.f32 %v215, %v217
    %v219 = vld [vmem:[#allocation7 + $0x9] sm:$0x1]
    %v220 = vperm.slane %v219, 0
    %v221 = vadd.f32 %v218, %v220
    %v222 = vmax.f32 %v221, 0.0
    %v223 = vld [vmem:[#allocation8 + $0x9] sm:$0x1]
    %v224 = vperm.slane %v223, 0
    %v225 = vmul.f32 %v224, %v222
    %v226 = vadd.f32 %v212, %v225
    %v227 = vld [vmem:[%s4] sm:$0x1]
    %v229 = vperm.slane %v227, 0
    %v231 = vadd.f32 %v226, %v229
    %232 = vrot.lane.b32.xlu0 %v231, 1
    %v233 = vpop.permute.xlu0 %232
    %v234 = vsel %vm86, 1, 0
    %vm235 = vcmp.eq.s32.totalorder %v234, 1
    %v236 = vsel %vm235, %v231, %v233
    %v237 = vsub.f32 0.0, %v236
    %v238 = vsel %vm235, %v231, %v237
    %v239 = vmul.f32 %v238, 1.442695
    %v240 = vpow.pop %v239
    %v241 = vadd.f32 %v240, 1.0
    %v242 = vrcp.pop %v241
    %v243 = vmul.f32 %v241, %v242
    %v244 = vsub.f32 1.0, %v243
    %v245 = vmul.f32 %v242, %v244
    %v246 = vadd.f32 %v242, %v245
    %vm247 = vweird.f32 %v241
    %vm248 = vweird.f32 %v242
    %vm249 = vmor %vm247, %vm248
    %v250 = vsel %vm249, %v242, %v246
    %v251 = vand.u32 2147483647, %v241
    %vm252 = vcmp.eq.f32.partialorder %v251, 8.507059e+37
    %v253 = vand.u32 %v241, 2147483648
    %v254 = vor.u32 1.1754944e-38, %v253
    %v255 = vsel %vm252, %v254, %v250
    %v256 = vmul.f32 1.0, %v255
    %257 = vst [vmem:[#allocation10] sm:$0x3] %v256
    // Predicated region
    $region38: #{tpu_custom_call.1} parent=1 // pred_check
      _
    $region39: #{tpu_custom_call.1} parent=1 // pred_check_branch
      %259 = sbr.rel (0) target = $region41
    $region40: #{tpu_custom_call.1} parent=1 // pred_region
      %261 = vsyncadd [#allocation4], 0
      %s263 = sshll.u32 [#allocation10], 4
      %s264 = int_to_ptr.vmem [resolvable:$true] %s263
      %s265 = sshll.u32 %s5, 4
      %s266 = int_to_ptr.hbm [resolvable:$true] %s265
      %268 = dma.vmem_to_hbm [thread:$0]  %s264, 32, %s266, [#allocation4]
    $region41: #{tpu_custom_call.1} parent=1 // pred_fallthru
      _
    // Predicated region
    $region42: #{tpu_custom_call.1} parent=1 // pred_check
      _
    $region43: #{tpu_custom_call.1} parent=1 // pred_check_branch
      %270 = sbr.rel (0) target = $region45
    $region44: #{tpu_custom_call.1} parent=1 // pred_region
      %272 = dma.done [#allocation4], 32
    $region45: #{tpu_custom_call.1} parent=1 // pred_fallthru
      _
    %273 = vsyncpa [#allocation3], 1
    %274 = vsyncpa [#allocation6], 1
    %275 = vsyncpa [#allocation9], 1
    %276 = vsyncpa [#allocation4], 1

</llo_original>
